<compile_context>
chip_gen: v7x
topology: tpu7x:2x2x1
jax: 0.10.0
libtpu: 0.0.40
codegen_flags: <defaults>
</compile_context>

<pallas_src>
import jax
import jax.numpy as jnp
from jax.experimental import pallas as pl
from jax.experimental.pallas import tpu as pltpu


_NEG_BIG = -1e30  # padded-class bias -> exp underflows to exactly 0 in softmax


def _round_up(x, m):
    return ((x + m - 1) // m) * m


def _cdiv(a, b):
    return (a + b - 1) // b


def _reranker_kernel(src_ids_ref, tgt_ids_ref, lens_ref, table_ref,
                     w_ref, b_ref, logits_ref, probs_ref):
    BT, Ls = src_ids_ref.shape            # batch tile, src length
    _, Lt = tgt_ids_ref.shape             # tgt length
    VP, H = table_ref.shape               # padded vocab (zero sentinel rows), hidden

    lens = lens_ref[...]                  # [BT, 2] int32 (col0=src, col1=tgt)
    len_s = lens[:, 0:1]                  # [BT, 1]
    len_t = lens[:, 1:2]                  # [BT, 1]

    # One reciprocal for both columns (clamped so zero-length rows stay finite).
    inv = pl.reciprocal(jnp.maximum(lens, 1).astype(jnp.float32), approx=False)
    inv_s = inv[:, 0:1]                   # [BT, 1]
    inv_t = inv[:, 1:2]                   # [BT, 1]

    # Sentinel masking: out-of-length positions are remapped once to a padded
    # (all-zero) table row, so the hot loop needs no length test at all.
    sentinel = VP - 1
    pos_s = jax.lax.broadcasted_iota(jnp.int32, (BT, Ls), 1)
    pos_t = jax.lax.broadcasted_iota(jnp.int32, (BT, Lt), 1)
    ids_s = jnp.where(pos_s < len_s, src_ids_ref[...], sentinel)   # [BT, Ls]
    ids_t = jnp.where(pos_t < len_t, tgt_ids_ref[...], sentinel)   # [BT, Lt]

    # One-hot token counts over the (lane-dense) padded vocab.
    v_iota = jax.lax.broadcasted_iota(jnp.int32, (BT, VP), 1)

    def counts_of(ids, L):
        # TODO(synk): chunk this with lax.fori_loop (static intra-chunk
        # extracts) once L grows beyond ~64 to bound vreg live ranges.
        counts = jnp.zeros((BT, VP), jnp.float32)
        for l in range(L):                          # tiny static unroll
            counts = counts + (ids[:, l:l + 1] == v_iota).astype(jnp.float32)
        return counts

    cnt_s = counts_of(ids_s, Ls) * inv_s            # [BT, VP]  (counts / len)
    cnt_t = counts_of(ids_t, Lt) * inv_t            # [BT, VP]

    # Fused pooled matmul: one MXU weight push of the table for both sides.
    stacked = jnp.concatenate([cnt_s, cnt_t], axis=0)        # [2*BT, VP]
    table = table_ref[...].astype(jnp.float32)
    pooled = jnp.dot(stacked, table,
                     preferred_element_type=jnp.float32)     # [2*BT, H]
    pooled_s = pooled[:BT]                                   # [BT, H]
    pooled_t = pooled[BT:]                                   # [BT, H]

    # Classifier head: layout-free lane concat (each half 128-lane aligned)
    # -> one K=2H MXU pass.  Padded class columns: zero weights, -1e30 bias.
    feats = jnp.concatenate([pooled_s, pooled_t], axis=-1)   # [BT, 2H]
    logits = (jnp.dot(feats, w_ref[...].astype(jnp.float32),
                      preferred_element_type=jnp.float32)
              + b_ref[...])                                  # [BT, CP]

    # Numerically stable softmax; padded columns contribute exp(-1e30) == 0.
    m = jnp.max(logits, axis=-1, keepdims=True)
    e = jnp.exp(logits - m)
    probs = e * pl.reciprocal(jnp.sum(e, axis=-1, keepdims=True), approx=False)

    logits_ref[...] = logits
    probs_ref[...] = probs


def reranker_forward(src, tgt, src_lengths, tgt_lengths, params,
                     *, batch_tile=None):
    """Mirrors ReRankerModel.forward(src, tgt, src_lengths, tgt_lengths).

    src: [src_len, batch] int token ids     tgt: [tgt_len, batch] int token ids
    src_lengths, tgt_lengths: [batch] int
    Returns (logits [batch, C], probs [batch, C]).
    """
    emb_table = params["embedding"]
    w = params["w"]
    b = params["b"]

    Ls, B = src.shape
    Lt, _ = tgt.shape
    V, H = emb_table.shape
    H2, C = w.shape
    assert H2 == 2 * H, "classifier expects concat([pool_src, pool_tgt])"

    VP = _round_up(V + 1, 128)           # padded vocab (>= one zero sentinel row)
    CP = _round_up(max(C, 1), 128)       # lane-dense class dim

    # Batch tile: big tiles amortize grid-step overhead; >=2 grid points when
    # B >= 16 so v7x's second TensorCore gets work via dimension_semantics.
    if batch_tile is not None:
        BT = int(batch_tile)
    elif B >= 16:
        BT = min(256, _round_up(_cdiv(B, 2), 8))
    else:
        BT = B
    nbt = _cdiv(B, BT)
    Bp = nbt * BT

    def pad_rows(x):
        if x.shape[0] == Bp:
            return x
        pad = jnp.zeros((Bp - x.shape[0],) + tuple(x.shape[1:]), x.dtype)
        return jnp.concatenate([x, pad], axis=0)

    # Batch-major token ids (tiny int32 transpose; embedding gather is in-kernel).
    src_ids = pad_rows(jnp.asarray(src, jnp.int32).T)                  # [Bp, Ls]
    tgt_ids = pad_rows(jnp.asarray(tgt, jnp.int32).T)                  # [Bp, Lt]
    lens = pad_rows(jnp.stack([jnp.asarray(src_lengths, jnp.int32),
                               jnp.asarray(tgt_lengths, jnp.int32)], axis=1))  # [Bp, 2]

    # Zero-padded table (pad rows double as the sentinel row) + padded head.
    table = jnp.zeros((VP, H), jnp.float32).at[:V].set(
        emb_table.astype(jnp.float32))
    w_pad = jnp.zeros((2 * H, CP), jnp.float32).at[:, :C].set(
        w.astype(jnp.float32))
    b_pad = jnp.full((1, CP), _NEG_BIG, jnp.float32).at[0, :C].set(
        b.astype(jnp.float32))

    out_shapes = (
        jax.ShapeDtypeStruct((Bp, CP), jnp.float32),   # lane-padded logits
        jax.ShapeDtypeStruct((Bp, CP), jnp.float32),   # lane-padded probs
    )

    batch_spec = lambda lane: pl.BlockSpec((BT, lane), lambda i: (i, 0))
    const_spec = lambda shape: pl.BlockSpec(tuple(shape), lambda i: (0,) * len(shape))

    logits_pad, probs_pad = pl.pallas_call(
        _reranker_kernel,
        out_shape=out_shapes,
        grid=(nbt,),
        in_specs=[
            batch_spec(Ls),                 # src token ids
            batch_spec(Lt),                 # tgt token ids
            batch_spec(2),                  # lengths (src, tgt)
            const_spec(table.shape),        # padded embedding table
            const_spec(w_pad.shape),        # stacked classifier weights
            const_spec(b_pad.shape),        # padded bias
        ],
        out_specs=(
            pl.BlockSpec((BT, CP), lambda i: (i, 0)),
            pl.BlockSpec((BT, CP), lambda i: (i, 0)),
        ),
        compiler_params=pltpu.CompilerParams(
            dimension_semantics=("parallel",),      # megacore sharding on v7x
            vmem_limit_bytes=32 * 1024 * 1024,      # explicit, fits all gens
        ),
    )(src_ids, tgt_ids, lens, table, w_pad, b_pad)

    return logits_pad[:B, :C], probs_pad[:B, :C]


def init_params(key, vocab=32, hidden=128, num_classes=2):
    k_emb, k_w, k_b = jax.random.split(key, 3)
    return {
        "embedding": jax.random.normal(k_emb, (vocab, hidden), jnp.float32) * 0.02,
        "w": jax.random.normal(k_w, (2 * hidden, num_classes), jnp.float32) * 0.05,
        "b": jax.random.normal(k_b, (num_classes,), jnp.float32) * 0.01,
    }


if __name__ == "__main__":
    key = jax.random.PRNGKey(0)
    k_params, k_src, k_tgt, k_sl, k_tl = jax.random.split(key, 5)

    VOCAB, HIDDEN, CLASSES = 32, 128, 2
    SRC_LEN, TGT_LEN, BATCH = 16, 8, 8

    params = init_params(k_params, VOCAB, HIDDEN, CLASSES)

    # PyTorch-convention inputs: [len, batch] LongTensors + [batch] lengths.
    src = jax.random.randint(k_src, (SRC_LEN, BATCH), 0, VOCAB, jnp.int32)
    tgt = jax.random.randint(k_tgt, (TGT_LEN, BATCH), 0, VOCAB, jnp.int32)
    src_lengths = jax.random.randint(k_sl, (BATCH,), 1, SRC_LEN + 1, jnp.int32)
    tgt_lengths = jax.random.randint(k_tl, (BATCH,), 1, TGT_LEN + 1, jnp.int32)

    logits, probs = reranker_forward(src, tgt, src_lengths, tgt_lengths, params)
    jax.block_until_ready((logits, probs))

    # Pure-JAX reference (same math as the synthetic reranker forward).
    def ref(src, tgt, sl, tl, p):
        se = jnp.take(p["embedding"], src, axis=0).transpose(1, 0, 2)
        te = jnp.take(p["embedding"], tgt, axis=0).transpose(1, 0, 2)
        ms = (jnp.arange(SRC_LEN)[None, :, None] < sl[:, None, None]).astype(jnp.float32)
        mt = (jnp.arange(TGT_LEN)[None, :, None] < tl[:, None, None]).astype(jnp.float32)
        ps = (se * ms).sum(1) / sl[:, None].astype(jnp.float32)
        pt = (te * mt).sum(1) / tl[:, None].astype(jnp.float32)
        lg = jnp.concatenate([ps, pt], -1) @ p["w"] + p["b"]
        return lg, jax.nn.softmax(lg, -1)

    rl, rp = ref(src, tgt, src_lengths, tgt_lengths, params)
    assert logits.shape == (BATCH, CLASSES) and probs.shape == (BATCH, CLASSES)
    assert jnp.allclose(logits, rl, atol=1e-4), "logits mismatch"
    assert jnp.allclose(probs, rp, atol=1e-4), "probs mismatch"

    print("KERNEL_OK")
</pallas_src>

<mosaic_0001>
module attributes {stable_mosaic.version = 11 : i64} {
  func.func @_reranker_kernel(%arg0: i32, %arg1: memref<8x16xi32, #tpu.memory_space<vmem>>, %arg2: memref<8x8xi32, #tpu.memory_space<vmem>>, %arg3: memref<8x2xi32, #tpu.memory_space<vmem>>, %arg4: memref<128x128xf32, #tpu.memory_space<vmem>>, %arg5: memref<256x128xf32, #tpu.memory_space<vmem>>, %arg6: memref<1x128xf32, #tpu.memory_space<vmem>>, %arg7: memref<8x128xf32, #tpu.memory_space<vmem>>, %arg8: memref<8x128xf32, #tpu.memory_space<vmem>>) attributes {dimension_semantics = [#tpu.dimension_semantics<parallel>], iteration_bounds = array<i64: 1>, scalar_prefetch = 0 : i64, scratch_operands = 0 : i64, tpu.core_type = #tpu.core_type<tc>, window_params = [{transform_indices = @transform_0, window_bounds = array<i64: 8, 16>}, {transform_indices = @transform_1, window_bounds = array<i64: 8, 8>}, {transform_indices = @transform_2, window_bounds = array<i64: 8, 2>}, {pipeline_mode = #tpu.pipeline_mode<synchronous>, transform_indices = @transform_3, window_bounds = array<i64: 128, 128>}, {pipeline_mode = #tpu.pipeline_mode<synchronous>, transform_indices = @transform_4, window_bounds = array<i64: 256, 128>}, {pipeline_mode = #tpu.pipeline_mode<synchronous>, transform_indices = @transform_5, window_bounds = array<i64: 1, 128>}, {transform_indices = @transform_6, window_bounds = array<i64: 8, 128>}, {transform_indices = @transform_7, window_bounds = array<i64: 8, 128>}]} {
    %c0 = arith.constant 0 : index
    %c0_0 = arith.constant 0 : index
    %0 = vector.load %arg3[%c0, %c0_0] : memref<8x2xi32, #tpu.memory_space<vmem>>, vector<8x2xi32>
    %1 = vector.extract_strided_slice %0 {offsets = [0, 0], sizes = [8, 1], strides = [1, 1]} : vector<8x2xi32> to vector<8x1xi32>
    %2 = vector.extract_strided_slice %0 {offsets = [0, 1], sizes = [8, 1], strides = [1, 1]} : vector<8x2xi32> to vector<8x1xi32>
    %c1_i32 = arith.constant 1 : i32
    %3 = vector.broadcast %c1_i32 : i32 to vector<8x2xi32>
    %4 = arith.maxsi %0, %3 : vector<8x2xi32>
    %5 = arith.sitofp %4 : vector<8x2xi32> to vector<8x2xf32>
    %6 = tpu.reciprocal %5 : vector<8x2xf32> -> vector<8x2xf32>
    %7 = vector.extract_strided_slice %6 {offsets = [0, 0], sizes = [8, 1], strides = [1, 1]} : vector<8x2xf32> to vector<8x1xf32>
    %8 = vector.extract_strided_slice %6 {offsets = [0, 1], sizes = [8, 1], strides = [1, 1]} : vector<8x2xf32> to vector<8x1xf32>
    %9 = tpu.iota {dimensions = array<i32: 1>} : vector<8x16xi32>
    %10 = tpu.iota {dimensions = array<i32: 1>} : vector<8x8xi32>
    %11 = vector.broadcast %1 : vector<8x1xi32> to vector<8x16xi32>
    %12 = arith.cmpi slt, %9, %11 : vector<8x16xi32>
    %c0_1 = arith.constant 0 : index
    %c0_2 = arith.constant 0 : index
    %13 = vector.load %arg1[%c0_1, %c0_2] : memref<8x16xi32, #tpu.memory_space<vmem>>, vector<8x16xi32>
    %c127_i32 = arith.constant 127 : i32
    %14 = vector.broadcast %c127_i32 : i32 to vector<8x16xi32>
    %15 = arith.select %12, %13, %14 : vector<8x16xi1>, vector<8x16xi32>
    %16 = vector.broadcast %2 : vector<8x1xi32> to vector<8x8xi32>
    %17 = arith.cmpi slt, %10, %16 : vector<8x8xi32>
    %c0_3 = arith.constant 0 : index
    %c0_4 = arith.constant 0 : index
    %18 = vector.load %arg2[%c0_3, %c0_4] : memref<8x8xi32, #tpu.memory_space<vmem>>, vector<8x8xi32>
    %c127_i32_5 = arith.constant 127 : i32
    %19 = vector.broadcast %c127_i32_5 : i32 to vector<8x8xi32>
    %20 = arith.select %17, %18, %19 : vector<8x8xi1>, vector<8x8xi32>
    %21 = tpu.iota {dimensions = array<i32: 1>} : vector<8x128xi32>
    %cst = arith.constant 0.000000e+00 : f32
    %22 = vector.broadcast %cst : f32 to vector<8x128xf32>
    %23 = vector.extract_strided_slice %15 {offsets = [0, 0], sizes = [8, 1], strides = [1, 1]} : vector<8x16xi32> to vector<8x1xi32>
    %24 = vector.broadcast %23 : vector<8x1xi32> to vector<8x128xi32>
    %25 = arith.cmpi eq, %24, %21 : vector<8x128xi32>
    %26 = arith.extui %25 : vector<8x128xi1> to vector<8x128xi32>
    %27 = arith.sitofp %26 : vector<8x128xi32> to vector<8x128xf32>
    %28 = arith.addf %22, %27 : vector<8x128xf32>
    %29 = vector.extract_strided_slice %15 {offsets = [0, 1], sizes = [8, 1], strides = [1, 1]} : vector<8x16xi32> to vector<8x1xi32>
    %30 = vector.broadcast %29 : vector<8x1xi32> to vector<8x128xi32>
    %31 = arith.cmpi eq, %30, %21 : vector<8x128xi32>
    %32 = arith.extui %31 : vector<8x128xi1> to vector<8x128xi32>
    %33 = arith.sitofp %32 : vector<8x128xi32> to vector<8x128xf32>
    %34 = arith.addf %28, %33 : vector<8x128xf32>
    %35 = vector.extract_strided_slice %15 {offsets = [0, 2], sizes = [8, 1], strides = [1, 1]} : vector<8x16xi32> to vector<8x1xi32>
    %36 = vector.broadcast %35 : vector<8x1xi32> to vector<8x128xi32>
    %37 = arith.cmpi eq, %36, %21 : vector<8x128xi32>
    %38 = arith.extui %37 : vector<8x128xi1> to vector<8x128xi32>
    %39 = arith.sitofp %38 : vector<8x128xi32> to vector<8x128xf32>
    %40 = arith.addf %34, %39 : vector<8x128xf32>
    %41 = vector.extract_strided_slice %15 {offsets = [0, 3], sizes = [8, 1], strides = [1, 1]} : vector<8x16xi32> to vector<8x1xi32>
    %42 = vector.broadcast %41 : vector<8x1xi32> to vector<8x128xi32>
    %43 = arith.cmpi eq, %42, %21 : vector<8x128xi32>
    %44 = arith.extui %43 : vector<8x128xi1> to vector<8x128xi32>
    %45 = arith.sitofp %44 : vector<8x128xi32> to vector<8x128xf32>
    %46 = arith.addf %40, %45 : vector<8x128xf32>
    %47 = vector.extract_strided_slice %15 {offsets = [0, 4], sizes = [8, 1], strides = [1, 1]} : vector<8x16xi32> to vector<8x1xi32>
    %48 = vector.broadcast %47 : vector<8x1xi32> to vector<8x128xi32>
    %49 = arith.cmpi eq, %48, %21 : vector<8x128xi32>
    %50 = arith.extui %49 : vector<8x128xi1> to vector<8x128xi32>
    %51 = arith.sitofp %50 : vector<8x128xi32> to vector<8x128xf32>
    %52 = arith.addf %46, %51 : vector<8x128xf32>
    %53 = vector.extract_strided_slice %15 {offsets = [0, 5], sizes = [8, 1], strides = [1, 1]} : vector<8x16xi32> to vector<8x1xi32>
    %54 = vector.broadcast %53 : vector<8x1xi32> to vector<8x128xi32>
    %55 = arith.cmpi eq, %54, %21 : vector<8x128xi32>
    %56 = arith.extui %55 : vector<8x128xi1> to vector<8x128xi32>
    %57 = arith.sitofp %56 : vector<8x128xi32> to vector<8x128xf32>
    %58 = arith.addf %52, %57 : vector<8x128xf32>
    %59 = vector.extract_strided_slice %15 {offsets = [0, 6], sizes = [8, 1], strides = [1, 1]} : vector<8x16xi32> to vector<8x1xi32>
    %60 = vector.broadcast %59 : vector<8x1xi32> to vector<8x128xi32>
    %61 = arith.cmpi eq, %60, %21 : vector<8x128xi32>
    %62 = arith.extui %61 : vector<8x128xi1> to vector<8x128xi32>
    %63 = arith.sitofp %62 : vector<8x128xi32> to vector<8x128xf32>
    %64 = arith.addf %58, %63 : vector<8x128xf32>
    %65 = vector.extract_strided_slice %15 {offsets = [0, 7], sizes = [8, 1], strides = [1, 1]} : vector<8x16xi32> to vector<8x1xi32>
    %66 = vector.broadcast %65 : vector<8x1xi32> to vector<8x128xi32>
    %67 = arith.cmpi eq, %66, %21 : vector<8x128xi32>
    %68 = arith.extui %67 : vector<8x128xi1> to vector<8x128xi32>
    %69 = arith.sitofp %68 : vector<8x128xi32> to vector<8x128xf32>
    %70 = arith.addf %64, %69 : vector<8x128xf32>
    %71 = vector.extract_strided_slice %15 {offsets = [0, 8], sizes = [8, 1], strides = [1, 1]} : vector<8x16xi32> to vector<8x1xi32>
    %72 = vector.broadcast %71 : vector<8x1xi32> to vector<8x128xi32>
    %73 = arith.cmpi eq, %72, %21 : vector<8x128xi32>
    %74 = arith.extui %73 : vector<8x128xi1> to vector<8x128xi32>
    %75 = arith.sitofp %74 : vector<8x128xi32> to vector<8x128xf32>
    %76 = arith.addf %70, %75 : vector<8x128xf32>
    %77 = vector.extract_strided_slice %15 {offsets = [0, 9], sizes = [8, 1], strides = [1, 1]} : vector<8x16xi32> to vector<8x1xi32>
    %78 = vector.broadcast %77 : vector<8x1xi32> to vector<8x128xi32>
    %79 = arith.cmpi eq, %78, %21 : vector<8x128xi32>
    %80 = arith.extui %79 : vector<8x128xi1> to vector<8x128xi32>
    %81 = arith.sitofp %80 : vector<8x128xi32> to vector<8x128xf32>
    %82 = arith.addf %76, %81 : vector<8x128xf32>
    %83 = vector.extract_strided_slice %15 {offsets = [0, 10], sizes = [8, 1], strides = [1, 1]} : vector<8x16xi32> to vector<8x1xi32>
    %84 = vector.broadcast %83 : vector<8x1xi32> to vector<8x128xi32>
    %85 = arith.cmpi eq, %84, %21 : vector<8x128xi32>
    %86 = arith.extui %85 : vector<8x128xi1> to vector<8x128xi32>
    %87 = arith.sitofp %86 : vector<8x128xi32> to vector<8x128xf32>
    %88 = arith.addf %82, %87 : vector<8x128xf32>
    %89 = vector.extract_strided_slice %15 {offsets = [0, 11], sizes = [8, 1], strides = [1, 1]} : vector<8x16xi32> to vector<8x1xi32>
    %90 = vector.broadcast %89 : vector<8x1xi32> to vector<8x128xi32>
    %91 = arith.cmpi eq, %90, %21 : vector<8x128xi32>
    %92 = arith.extui %91 : vector<8x128xi1> to vector<8x128xi32>
    %93 = arith.sitofp %92 : vector<8x128xi32> to vector<8x128xf32>
    %94 = arith.addf %88, %93 : vector<8x128xf32>
    %95 = vector.extract_strided_slice %15 {offsets = [0, 12], sizes = [8, 1], strides = [1, 1]} : vector<8x16xi32> to vector<8x1xi32>
    %96 = vector.broadcast %95 : vector<8x1xi32> to vector<8x128xi32>
    %97 = arith.cmpi eq, %96, %21 : vector<8x128xi32>
    %98 = arith.extui %97 : vector<8x128xi1> to vector<8x128xi32>
    %99 = arith.sitofp %98 : vector<8x128xi32> to vector<8x128xf32>
    %100 = arith.addf %94, %99 : vector<8x128xf32>
    %101 = vector.extract_strided_slice %15 {offsets = [0, 13], sizes = [8, 1], strides = [1, 1]} : vector<8x16xi32> to vector<8x1xi32>
    %102 = vector.broadcast %101 : vector<8x1xi32> to vector<8x128xi32>
    %103 = arith.cmpi eq, %102, %21 : vector<8x128xi32>
    %104 = arith.extui %103 : vector<8x128xi1> to vector<8x128xi32>
    %105 = arith.sitofp %104 : vector<8x128xi32> to vector<8x128xf32>
    %106 = arith.addf %100, %105 : vector<8x128xf32>
    %107 = vector.extract_strided_slice %15 {offsets = [0, 14], sizes = [8, 1], strides = [1, 1]} : vector<8x16xi32> to vector<8x1xi32>
    %108 = vector.broadcast %107 : vector<8x1xi32> to vector<8x128xi32>
    %109 = arith.cmpi eq, %108, %21 : vector<8x128xi32>
    %110 = arith.extui %109 : vector<8x128xi1> to vector<8x128xi32>
    %111 = arith.sitofp %110 : vector<8x128xi32> to vector<8x128xf32>
    %112 = arith.addf %106, %111 : vector<8x128xf32>
    %113 = vector.extract_strided_slice %15 {offsets = [0, 15], sizes = [8, 1], strides = [1, 1]} : vector<8x16xi32> to vector<8x1xi32>
    %114 = vector.broadcast %113 : vector<8x1xi32> to vector<8x128xi32>
    %115 = arith.cmpi eq, %114, %21 : vector<8x128xi32>
    %116 = arith.extui %115 : vector<8x128xi1> to vector<8x128xi32>
    %117 = arith.sitofp %116 : vector<8x128xi32> to vector<8x128xf32>
    %118 = arith.addf %112, %117 : vector<8x128xf32>
    %119 = vector.broadcast %7 : vector<8x1xf32> to vector<8x128xf32>
    %120 = arith.mulf %118, %119 : vector<8x128xf32>
    %cst_6 = arith.constant 0.000000e+00 : f32
    %121 = vector.broadcast %cst_6 : f32 to vector<8x128xf32>
    %122 = vector.extract_strided_slice %20 {offsets = [0, 0], sizes = [8, 1], strides = [1, 1]} : vector<8x8xi32> to vector<8x1xi32>
    %123 = vector.broadcast %122 : vector<8x1xi32> to vector<8x128xi32>
    %124 = arith.cmpi eq, %123, %21 : vector<8x128xi32>
    %125 = arith.extui %124 : vector<8x128xi1> to vector<8x128xi32>
    %126 = arith.sitofp %125 : vector<8x128xi32> to vector<8x128xf32>
    %127 = arith.addf %121, %126 : vector<8x128xf32>
    %128 = vector.extract_strided_slice %20 {offsets = [0, 1], sizes = [8, 1], strides = [1, 1]} : vector<8x8xi32> to vector<8x1xi32>
    %129 = vector.broadcast %128 : vector<8x1xi32> to vector<8x128xi32>
    %130 = arith.cmpi eq, %129, %21 : vector<8x128xi32>
    %131 = arith.extui %130 : vector<8x128xi1> to vector<8x128xi32>
    %132 = arith.sitofp %131 : vector<8x128xi32> to vector<8x128xf32>
    %133 = arith.addf %127, %132 : vector<8x128xf32>
    %134 = vector.extract_strided_slice %20 {offsets = [0, 2], sizes = [8, 1], strides = [1, 1]} : vector<8x8xi32> to vector<8x1xi32>
    %135 = vector.broadcast %134 : vector<8x1xi32> to vector<8x128xi32>
    %136 = arith.cmpi eq, %135, %21 : vector<8x128xi32>
    %137 = arith.extui %136 : vector<8x128xi1> to vector<8x128xi32>
    %138 = arith.sitofp %137 : vector<8x128xi32> to vector<8x128xf32>
    %139 = arith.addf %133, %138 : vector<8x128xf32>
    %140 = vector.extract_strided_slice %20 {offsets = [0, 3], sizes = [8, 1], strides = [1, 1]} : vector<8x8xi32> to vector<8x1xi32>
    %141 = vector.broadcast %140 : vector<8x1xi32> to vector<8x128xi32>
    %142 = arith.cmpi eq, %141, %21 : vector<8x128xi32>
    %143 = arith.extui %142 : vector<8x128xi1> to vector<8x128xi32>
    %144 = arith.sitofp %143 : vector<8x128xi32> to vector<8x128xf32>
    %145 = arith.addf %139, %144 : vector<8x128xf32>
    %146 = vector.extract_strided_slice %20 {offsets = [0, 4], sizes = [8, 1], strides = [1, 1]} : vector<8x8xi32> to vector<8x1xi32>
    %147 = vector.broadcast %146 : vector<8x1xi32> to vector<8x128xi32>
    %148 = arith.cmpi eq, %147, %21 : vector<8x128xi32>
    %149 = arith.extui %148 : vector<8x128xi1> to vector<8x128xi32>
    %150 = arith.sitofp %149 : vector<8x128xi32> to vector<8x128xf32>
    %151 = arith.addf %145, %150 : vector<8x128xf32>
    %152 = vector.extract_strided_slice %20 {offsets = [0, 5], sizes = [8, 1], strides = [1, 1]} : vector<8x8xi32> to vector<8x1xi32>
    %153 = vector.broadcast %152 : vector<8x1xi32> to vector<8x128xi32>
    %154 = arith.cmpi eq, %153, %21 : vector<8x128xi32>
    %155 = arith.extui %154 : vector<8x128xi1> to vector<8x128xi32>
    %156 = arith.sitofp %155 : vector<8x128xi32> to vector<8x128xf32>
    %157 = arith.addf %151, %156 : vector<8x128xf32>
    %158 = vector.extract_strided_slice %20 {offsets = [0, 6], sizes = [8, 1], strides = [1, 1]} : vector<8x8xi32> to vector<8x1xi32>
    %159 = vector.broadcast %158 : vector<8x1xi32> to vector<8x128xi32>
    %160 = arith.cmpi eq, %159, %21 : vector<8x128xi32>
    %161 = arith.extui %160 : vector<8x128xi1> to vector<8x128xi32>
    %162 = arith.sitofp %161 : vector<8x128xi32> to vector<8x128xf32>
    %163 = arith.addf %157, %162 : vector<8x128xf32>
    %164 = vector.extract_strided_slice %20 {offsets = [0, 7], sizes = [8, 1], strides = [1, 1]} : vector<8x8xi32> to vector<8x1xi32>
    %165 = vector.broadcast %164 : vector<8x1xi32> to vector<8x128xi32>
    %166 = arith.cmpi eq, %165, %21 : vector<8x128xi32>
    %167 = arith.extui %166 : vector<8x128xi1> to vector<8x128xi32>
    %168 = arith.sitofp %167 : vector<8x128xi32> to vector<8x128xf32>
    %169 = arith.addf %163, %168 : vector<8x128xf32>
    %170 = vector.broadcast %8 : vector<8x1xf32> to vector<8x128xf32>
    %171 = arith.mulf %169, %170 : vector<8x128xf32>
    %172 = tpu.concatenate %120, %171 in 0 : vector<8x128xf32>, vector<8x128xf32> -> vector<16x128xf32>
    %c0_7 = arith.constant 0 : index
    %c0_8 = arith.constant 0 : index
    %173 = vector.load %arg4[%c0_7, %c0_8] : memref<128x128xf32, #tpu.memory_space<vmem>>, vector<128x128xf32>
    %cst_9 = arith.constant dense<0.000000e+00> : vector<16x128xf32>
    %174 = tpu.matmul %172, %173, %cst_9 {dimension_numbers = #tpu.dot_dimension_numbers<[1], [0], [0], [1], [0, 0, 1, 1], [], []>} : vector<16x128xf32>, vector<128x128xf32>, vector<16x128xf32> -> vector<16x128xf32>
    %175 = vector.extract_strided_slice %174 {offsets = [0, 0], sizes = [8, 128], strides = [1, 1]} : vector<16x128xf32> to vector<8x128xf32>
    %176 = vector.extract_strided_slice %174 {offsets = [8, 0], sizes = [8, 128], strides = [1, 1]} : vector<16x128xf32> to vector<8x128xf32>
    %177 = tpu.concatenate %175, %176 in 1 : vector<8x128xf32>, vector<8x128xf32> -> vector<8x256xf32>
    %c0_10 = arith.constant 0 : index
    %c0_11 = arith.constant 0 : index
    %178 = vector.load %arg5[%c0_10, %c0_11] : memref<256x128xf32, #tpu.memory_space<vmem>>, vector<256x128xf32>
    %cst_12 = arith.constant dense<0.000000e+00> : vector<8x128xf32>
    %179 = tpu.matmul %177, %178, %cst_12 {dimension_numbers = #tpu.dot_dimension_numbers<[1], [0], [0], [1], [0, 0, 1, 1], [], []>} : vector<8x256xf32>, vector<256x128xf32>, vector<8x128xf32> -> vector<8x128xf32>
    %c0_13 = arith.constant 0 : index
    %c0_14 = arith.constant 0 : index
    %180 = vector.load %arg6[%c0_13, %c0_14] : memref<1x128xf32, #tpu.memory_space<vmem>>, vector<1x128xf32>
    %181 = vector.broadcast %180 : vector<1x128xf32> to vector<8x128xf32>
    %182 = arith.addf %179, %181 : vector<8x128xf32>
    %cst_15 = arith.constant dense<0xFF800000> : vector<8xf32>
    %183 = vector.multi_reduction <maximumf>, %182, %cst_15 [1] : vector<8x128xf32> to vector<8xf32>
    %184 = vector.shape_cast %183 : vector<8xf32> to vector<8x1xf32>
    %185 = vector.broadcast %184 : vector<8x1xf32> to vector<8x128xf32>
    %186 = arith.subf %182, %185 : vector<8x128xf32>
    %187 = math.exp %186 : vector<8x128xf32>
    %cst_16 = arith.constant dense<0.000000e+00> : vector<8xf32>
    %188 = vector.multi_reduction <add>, %187, %cst_16 [1] : vector<8x128xf32> to vector<8xf32>
    %189 = vector.shape_cast %188 : vector<8xf32> to vector<8x1xf32>
    %190 = tpu.reciprocal %189 : vector<8x1xf32> -> vector<8x1xf32>
    %191 = vector.broadcast %190 : vector<8x1xf32> to vector<8x128xf32>
    %192 = arith.mulf %187, %191 : vector<8x128xf32>
    %c0_17 = arith.constant 0 : index
    %c0_18 = arith.constant 0 : index
    %193 = vector.load %arg7[%c0_17, %c0_18] : memref<8x128xf32, #tpu.memory_space<vmem>>, vector<8x128xf32>
    tpu.vector_store %arg7[%c0_17, %c0_18], %182 {strides = array<i32>} : memref<8x128xf32, #tpu.memory_space<vmem>>, vector<8x128xf32>,
    %c0_19 = arith.constant 0 : index
    %c0_20 = arith.constant 0 : index
    %194 = vector.load %arg8[%c0_19, %c0_20] : memref<8x128xf32, #tpu.memory_space<vmem>>, vector<8x128xf32>
    tpu.vector_store %arg8[%c0_19, %c0_20], %192 {strides = array<i32>} : memref<8x128xf32, #tpu.memory_space<vmem>>, vector<8x128xf32>,
    return
  }
  func.func @transform_0(%arg0: i32) -> (i32, i32) {
    %c0_i32 = arith.constant 0 : i32
    %c0_i32_0 = arith.constant 0 : i32
    return %arg0, %c0_i32 : i32, i32
  }
  func.func @transform_1(%arg0: i32) -> (i32, i32) {
    %c0_i32 = arith.constant 0 : i32
    %c0_i32_0 = arith.constant 0 : i32
    return %arg0, %c0_i32 : i32, i32
  }
  func.func @transform_2(%arg0: i32) -> (i32, i32) {
    %c0_i32 = arith.constant 0 : i32
    %c0_i32_0 = arith.constant 0 : i32
    return %arg0, %c0_i32 : i32, i32
  }
  func.func @transform_3(%arg0: i32) -> (i32, i32) {
    %c0_i32 = arith.constant 0 : i32
    %c0_i32_0 = arith.constant 0 : i32
    %c0_i32_1 = arith.constant 0 : i32
    return %c0_i32, %c0_i32_0 : i32, i32
  }
  func.func @transform_4(%arg0: i32) -> (i32, i32) {
    %c0_i32 = arith.constant 0 : i32
    %c0_i32_0 = arith.constant 0 : i32
    %c0_i32_1 = arith.constant 0 : i32
    return %c0_i32, %c0_i32_0 : i32, i32
  }
  func.func @transform_5(%arg0: i32) -> (i32, i32) {
    %c0_i32 = arith.constant 0 : i32
    %c0_i32_0 = arith.constant 0 : i32
    %c0_i32_1 = arith.constant 0 : i32
    return %c0_i32, %c0_i32_0 : i32, i32
  }
  func.func @transform_6(%arg0: i32) -> (i32, i32) {
    %c0_i32 = arith.constant 0 : i32
    %c0_i32_0 = arith.constant 0 : i32
    return %arg0, %c0_i32 : i32, i32
  }
  func.func @transform_7(%arg0: i32) -> (i32, i32) {
    %c0_i32 = arith.constant 0 : i32
    %c0_i32_0 = arith.constant 0 : i32
    return %arg0, %c0_i32 : i32, i32
  }
}

</mosaic_0001>

<llo_original>
// kernel: tpu_custom_call.1
$region0: #{tpu_custom_call.1}
  #allocation0 [shape = 'u32[]', space=smem, size = 0x4, offset = 0x4, fixed_abs, tag = 'smem constant byte address 0x4 - core index']
  #allocation1 [shape = 'u32[144,128]{1,0:T(1,128)}', space=vmem, size = 0x12000, scoped, tag = 'internal scratch']
  %s0 = inlined_call_operand.vmem [shape: s32[8,16], index: 0, kind: input, shape index: {}]
  %s1 = inlined_call_operand.hbm [shape: s32[8,8], index: 1, kind: input, shape index: {}]
  %s2 = inlined_call_operand.vmem [shape: s32[8,2], index: 2, kind: input, shape index: {}]
  %s3 = inlined_call_operand.hbm [shape: f32[128,128], index: 3, kind: input, shape index: {}]
  %s4 = inlined_call_operand.hbm [shape: f32[256,128], index: 4, kind: input, shape index: {}]
  %s5 = inlined_call_operand.vmem [shape: f32[1,128], index: 5, kind: input, shape index: {}]
  %s6 = inlined_call_operand.hbm [shape: f32[8,128], index: 6, kind: output, shape index: {0}]
  %s7 = inlined_call_operand.hbm [shape: f32[8,128], index: 7, kind: output, shape index: {1}]
  %8 = xla_tuple %s6, %s7
  %s9 = sld [smem:[#allocation0]]
  $region54: #{tpu_custom_call.1} parent=0
    _
  %s11 = ssub.s32 1, %s9
  %s12 = scalar_select 0, %s11, %s9
  $region1: #{tpu_custom_call.1} parent=0
    #allocation2 [shape = 'u8[4096]{0}', space=vmem, size = 0x1000, scoped, tag = 'input window, operand 1, single buffered']
    #allocation3 [shape = 's32[1]{0}', space=sflag, size = 0x4, scoped, tag = 'scoped memory for tpu_custom_call.1']
    #allocation4 [shape = 's32[1]{0}', space=sflag, size = 0x4, scoped, tag = 'scoped memory for tpu_custom_call.1']
    #allocation5 [shape = 'u8[65536]{0}', space=vmem, size = 0x10000, scoped, tag = 'input window, operand 3, single buffered']
    #allocation6 [shape = 's32[1]{0}', space=sflag, size = 0x4, scoped, tag = 'scoped memory for tpu_custom_call.1']
    #allocation7 [shape = 'u8[131072]{0}', space=vmem, size = 0x20000, scoped, tag = 'input window, operand 4, single buffered']
    #allocation8 [shape = 'u8[4096]{0}', space=vmem, size = 0x1000, scoped, tag = 'output window, operand 0, single buffered']
    #allocation9 [shape = 'u8[4096]{0}', space=vmem, size = 0x1000, scoped, tag = 'output window, operand 1, single buffered']
    #allocation10 [shape = 's32[1]{0}', space=sflag, size = 0x4, scoped, tag = 'scoped memory for tpu_custom_call.1']
    %13 = vsyncpa [#allocation3], 0
    %14 = vsyncpa [#allocation6], 0
    %15 = vsyncpa [#allocation4], 0
    %16 = vsyncpa [#allocation10], 0
    // Predicated region
    $region2: #{tpu_custom_call.1} parent=1 // pred_check
      _
    $region3: #{tpu_custom_call.1} parent=1 // pred_check_branch
      %18 = sbr.rel (0) target = $region5
    $region4: #{tpu_custom_call.1} parent=1 // pred_region
      _
    $region5: #{tpu_custom_call.1} parent=1 // pred_fallthru
      _
    // Predicated region
    $region6: #{tpu_custom_call.1} parent=1 // pred_check
      _
    $region7: #{tpu_custom_call.1} parent=1 // pred_check_branch
      %20 = sbr.rel (0) target = $region9
    $region8: #{tpu_custom_call.1} parent=1 // pred_region
      %s22 = ssub.s32 128, 128
      %23 = vsyncadd [#allocation3], %s22
      %s25 = sshll.u32 [#allocation2], 4
      %s26 = int_to_ptr.vmem [resolvable:$true] %s25
      %28 = dma.hbm_to_vmem [thread:$0]  %s1, 128, %s26, [#allocation3]
    $region9: #{tpu_custom_call.1} parent=1 // pred_fallthru
      _
    // Predicated region
    $region10: #{tpu_custom_call.1} parent=1 // pred_check
      _
    $region11: #{tpu_custom_call.1} parent=1 // pred_check_branch
      %30 = sbr.rel (0) target = $region13
    $region12: #{tpu_custom_call.1} parent=1 // pred_region
      _
    $region13: #{tpu_custom_call.1} parent=1 // pred_fallthru
      _
    // Predicated region
    $region14: #{tpu_custom_call.1} parent=1 // pred_check
      _
    $region15: #{tpu_custom_call.1} parent=1 // pred_check_branch
      %32 = sbr.rel (0) target = $region17
    $region16: #{tpu_custom_call.1} parent=1 // pred_region
      %s34 = ssub.s32 2048, 2048
      %35 = vsyncadd [#allocation6], %s34
      %s36 = sshll.u32 [#allocation5], 4
      %s37 = int_to_ptr.vmem [resolvable:$true] %s36
      %42 = dma.hbm_to_vmem [thread:$0]  %s3, 2048, %s37, [#allocation6], 128, 128, 8
    $region17: #{tpu_custom_call.1} parent=1 // pred_fallthru
      _
    // Predicated region
    $region18: #{tpu_custom_call.1} parent=1 // pred_check
      _
    $region19: #{tpu_custom_call.1} parent=1 // pred_check_branch
      %44 = sbr.rel (0) target = $region21
    $region20: #{tpu_custom_call.1} parent=1 // pred_region
      %s46 = ssub.s32 4096, 4096
      %47 = vsyncadd [#allocation6], %s46
      %s48 = sshll.u32 [#allocation7], 4
      %s49 = int_to_ptr.vmem [resolvable:$true] %s48
      %54 = dma.hbm_to_vmem [thread:$0]  %s4, 4096, %s49, [#allocation6], 128, 128, 8
    $region21: #{tpu_custom_call.1} parent=1 // pred_fallthru
      _
    // Predicated region
    $region22: #{tpu_custom_call.1} parent=1 // pred_check
      _
    $region23: #{tpu_custom_call.1} parent=1 // pred_check_branch
      %56 = sbr.rel (0) target = $region25
    $region24: #{tpu_custom_call.1} parent=1 // pred_region
      _
    $region25: #{tpu_custom_call.1} parent=1 // pred_fallthru
      _
    // Predicated region
    $region26: #{tpu_custom_call.1} parent=1 // pred_check
      _
    $region27: #{tpu_custom_call.1} parent=1 // pred_check_branch
      %58 = sbr.rel (0) target = $region29
    $region28: #{tpu_custom_call.1} parent=1 // pred_region
      %59 = dma.done [#allocation3], 128
    $region29: #{tpu_custom_call.1} parent=1 // pred_fallthru
      _
    // Predicated region
    $region30: #{tpu_custom_call.1} parent=1 // pred_check
      _
    $region31: #{tpu_custom_call.1} parent=1 // pred_check_branch
      %61 = sbr.rel (0) target = $region33
    $region32: #{tpu_custom_call.1} parent=1 // pred_region
      %62 = dma.done [#allocation6], 2048
    $region33: #{tpu_custom_call.1} parent=1 // pred_fallthru
      _
    // Predicated region
    $region34: #{tpu_custom_call.1} parent=1 // pred_check
      _
    $region35: #{tpu_custom_call.1} parent=1 // pred_check_branch
      %64 = sbr.rel (0) target = $region37
    $region36: #{tpu_custom_call.1} parent=1 // pred_region
      %65 = dma.done [#allocation6], 4096
    $region37: #{tpu_custom_call.1} parent=1 // pred_fallthru
      _
    %v66 = vld [vmem:[%s2] sm:$0xff]
    %vm67 = vcmp.gt.s32.totalorder %v66, 1
    %v68 = vsel %vm67, %v66, 1
    %v69 = vcvt.s32.f32 %v68
    %v70 = vrcp.pop %v69
    %v71 = vlaneseq
    %v72 = vand.u32 %v71, 127
    %73 = vset.pattern.permute.xlu0 0
    %74 = vperm.xlu0 %73, %v66
    %v75 = vpop.permute.xlu0 %74
    %vm76 = vcmp.lt.s32.totalorder %v72, %v75
    %v77 = vld [vmem:[%s0] sm:$0xff]
    %v78 = vsel %vm76, %v77, 127
    %79 = vset.pattern.permute.xlu0 1
    %80 = vperm.xlu0 %79, %v66
    %v81 = vpop.permute.xlu0 %80
    %vm82 = vcmp.lt.s32.totalorder %v72, %v81
    %v83 = vld [vmem:[#allocation2] sm:$0xff]
    %v84 = vsel %vm82, %v83, 127
    %85 = vset.pattern.permute.xlu0 0
    %86 = vperm.xlu0 %85, %v78
    %v87 = vpop.permute.xlu0 %86
    %vm88 = vcmp.eq.s32.totalorder %v87, %v72
    %v89 = vsel %vm88, 1, 0
    %v90 = vcvt.s32.f32 %v89
    %v91 = vadd.f32 %v90, 0.0
    %92 = vset.pattern.permute.xlu0 1
    %93 = vperm.xlu0 %92, %v78
    %v94 = vpop.permute.xlu0 %93
    %vm95 = vcmp.eq.s32.totalorder %v94, %v72
    %v96 = vsel %vm95, 1, 0
    %v97 = vcvt.s32.f32 %v96
    %v98 = vadd.f32 %v91, %v97
    %99 = vset.pattern.permute.xlu0 2
    %100 = vperm.xlu0 %99, %v78
    %v101 = vpop.permute.xlu0 %100
    %vm102 = vcmp.eq.s32.totalorder %v101, %v72
    %v103 = vsel %vm102, 1, 0
    %v104 = vcvt.s32.f32 %v103
    %v105 = vadd.f32 %v98, %v104
    %106 = vset.pattern.permute.xlu0 3
    %107 = vperm.xlu0 %106, %v78
    %v108 = vpop.permute.xlu0 %107
    %vm109 = vcmp.eq.s32.totalorder %v108, %v72
    %v110 = vsel %vm109, 1, 0
    %v111 = vcvt.s32.f32 %v110
    %v112 = vadd.f32 %v105, %v111
    %113 = vset.pattern.permute.xlu0 4
    %114 = vperm.xlu0 %113, %v78
    %v115 = vpop.permute.xlu0 %114
    %vm116 = vcmp.eq.s32.totalorder %v115, %v72
    %v117 = vsel %vm116, 1, 0
    %v118 = vcvt.s32.f32 %v117
    %v119 = vadd.f32 %v112, %v118
    %120 = vset.pattern.permute.xlu0 5
    %121 = vperm.xlu0 %120, %v78
    %v122 = vpop.permute.xlu0 %121
    %vm123 = vcmp.eq.s32.totalorder %v122, %v72
    %v124 = vsel %vm123, 1, 0
    %v125 = vcvt.s32.f32 %v124
    %v126 = vadd.f32 %v119, %v125
    %127 = vset.pattern.permute.xlu0 6
    %128 = vperm.xlu0 %127, %v78
    %v129 = vpop.permute.xlu0 %128
    %vm130 = vcmp.eq.s32.totalorder %v129, %v72
    %v131 = vsel %vm130, 1, 0
    %v132 = vcvt.s32.f32 %v131
    %v133 = vadd.f32 %v126, %v132
    %134 = vset.pattern.permute.xlu0 7
    %135 = vperm.xlu0 %134, %v78
    %v136 = vpop.permute.xlu0 %135
    %vm137 = vcmp.eq.s32.totalorder %v136, %v72
    %v138 = vsel %vm137, 1, 0
    %v139 = vcvt.s32.f32 %v138
    %v140 = vadd.f32 %v133, %v139
    %141 = vset.pattern.permute.xlu0 8
    %142 = vperm.xlu0 %141, %v78
    %v143 = vpop.permute.xlu0 %142
    %vm144 = vcmp.eq.s32.totalorder %v143, %v72
    %v145 = vsel %vm144, 1, 0
    %v146 = vcvt.s32.f32 %v145
    %v147 = vadd.f32 %v140, %v146
    %148 = vset.pattern.permute.xlu0 9
    %149 = vperm.xlu0 %148, %v78
    %v150 = vpop.permute.xlu0 %149
    %vm151 = vcmp.eq.s32.totalorder %v150, %v72
    %v152 = vsel %vm151, 1, 0
    %v153 = vcvt.s32.f32 %v152
    %v154 = vadd.f32 %v147, %v153
    %155 = vset.pattern.permute.xlu0 10
    %156 = vperm.xlu0 %155, %v78
    %v157 = vpop.permute.xlu0 %156
    %vm158 = vcmp.eq.s32.totalorder %v157, %v72
    %v159 = vsel %vm158, 1, 0
    %v160 = vcvt.s32.f32 %v159
    %v161 = vadd.f32 %v154, %v160
    %162 = vset.pattern.permute.xlu0 11
    %163 = vperm.xlu0 %162, %v78
    %v164 = vpop.permute.xlu0 %163
    %vm165 = vcmp.eq.s32.totalorder %v164, %v72
    %v166 = vsel %vm165, 1, 0
    %v167 = vcvt.s32.f32 %v166
    %v168 = vadd.f32 %v161, %v167
    %169 = vset.pattern.permute.xlu0 12
    %170 = vperm.xlu0 %169, %v78
    %v171 = vpop.permute.xlu0 %170
    %vm172 = vcmp.eq.s32.totalorder %v171, %v72
    %v173 = vsel %vm172, 1, 0
    %v174 = vcvt.s32.f32 %v173
    %v175 = vadd.f32 %v168, %v174
    %176 = vset.pattern.permute.xlu0 13
    %177 = vperm.xlu0 %176, %v78
    %v178 = vpop.permute.xlu0 %177
    %vm179 = vcmp.eq.s32.totalorder %v178, %v72
    %v180 = vsel %vm179, 1, 0
    %v181 = vcvt.s32.f32 %v180
    %v182 = vadd.f32 %v175, %v181
    %183 = vset.pattern.permute.xlu0 14
    %184 = vperm.xlu0 %183, %v78
    %v185 = vpop.permute.xlu0 %184
    %vm186 = vcmp.eq.s32.totalorder %v185, %v72
    %v187 = vsel %vm186, 1, 0
    %v188 = vcvt.s32.f32 %v187
    %v189 = vadd.f32 %v182, %v188
    %190 = vset.pattern.permute.xlu0 15
    %191 = vperm.xlu0 %190, %v78
    %v192 = vpop.permute.xlu0 %191
    %vm193 = vcmp.eq.s32.totalorder %v192, %v72
    %v194 = vsel %vm193, 1, 0
    %v195 = vcvt.s32.f32 %v194
    %v196 = vadd.f32 %v189, %v195
    %198 = vset.pattern.permute.xlu0 0
    %199 = vperm.xlu0 %198, %v70
    %v200 = vpop.permute.xlu0 %199
    %v202 = vmul.f32 %v196, %v200
    %203 = vset.pattern.permute.xlu0 0
    %204 = vperm.xlu0 %203, %v84
    %v205 = vpop.permute.xlu0 %204
    %vm206 = vcmp.eq.s32.totalorder %v205, %v72
    %v207 = vsel %vm206, 1, 0
    %v208 = vcvt.s32.f32 %v207
    %v209 = vadd.f32 %v208, 0.0
    %210 = vset.pattern.permute.xlu0 1
    %211 = vperm.xlu0 %210, %v84
    %v212 = vpop.permute.xlu0 %211
    %vm213 = vcmp.eq.s32.totalorder %v212, %v72
    %v214 = vsel %vm213, 1, 0
    %v215 = vcvt.s32.f32 %v214
    %v216 = vadd.f32 %v209, %v215
    %217 = vset.pattern.permute.xlu0 2
    %218 = vperm.xlu0 %217, %v84
    %v219 = vpop.permute.xlu0 %218
    %vm220 = vcmp.eq.s32.totalorder %v219, %v72
    %v221 = vsel %vm220, 1, 0
    %v222 = vcvt.s32.f32 %v221
    %v223 = vadd.f32 %v216, %v222
    %224 = vset.pattern.permute.xlu0 3
    %225 = vperm.xlu0 %224, %v84
    %v226 = vpop.permute.xlu0 %225
    %vm227 = vcmp.eq.s32.totalorder %v226, %v72
    %v228 = vsel %vm227, 1, 0
    %v229 = vcvt.s32.f32 %v228
    %v230 = vadd.f32 %v223, %v229
    %231 = vset.pattern.permute.xlu0 4
    %232 = vperm.xlu0 %231, %v84
    %v233 = vpop.permute.xlu0 %232
    %vm234 = vcmp.eq.s32.totalorder %v233, %v72
    %v235 = vsel %vm234, 1, 0
    %v236 = vcvt.s32.f32 %v235
    %v237 = vadd.f32 %v230, %v236
    %238 = vset.pattern.permute.xlu0 5
    %239 = vperm.xlu0 %238, %v84
    %v240 = vpop.permute.xlu0 %239
    %vm241 = vcmp.eq.s32.totalorder %v240, %v72
    %v242 = vsel %vm241, 1, 0
    %v243 = vcvt.s32.f32 %v242
    %v244 = vadd.f32 %v237, %v243
    %245 = vset.pattern.permute.xlu0 6
    %246 = vperm.xlu0 %245, %v84
    %v247 = vpop.permute.xlu0 %246
    %vm248 = vcmp.eq.s32.totalorder %v247, %v72
    %v249 = vsel %vm248, 1, 0
    %v250 = vcvt.s32.f32 %v249
    %v251 = vadd.f32 %v244, %v250
    %252 = vset.pattern.permute.xlu0 7
    %253 = vperm.xlu0 %252, %v84
    %v254 = vpop.permute.xlu0 %253
    %vm255 = vcmp.eq.s32.totalorder %v254, %v72
    %v256 = vsel %vm255, 1, 0
    %v257 = vcvt.s32.f32 %v256
    %v258 = vadd.f32 %v251, %v257
    %259 = vset.pattern.permute.xlu0 1
    %260 = vperm.xlu0 %259, %v70
    %v261 = vpop.permute.xlu0 %260
    %v263 = vmul.f32 %v258, %v261
    %v264 = vld [vmem:[#allocation5] sm:$0xff]
    %v265 = vld [vmem:[#allocation5 + $0x8] sm:$0xff]
    %v266 = vld [vmem:[#allocation5 + $0x10] sm:$0xff]
    %v267 = vld [vmem:[#allocation5 + $0x18] sm:$0xff]
    %v268 = vld [vmem:[#allocation5 + $0x20] sm:$0xff]
    %v269 = vld [vmem:[#allocation5 + $0x28] sm:$0xff]
    %v270 = vld [vmem:[#allocation5 + $0x30] sm:$0xff]
    %v271 = vld [vmem:[#allocation5 + $0x38] sm:$0xff]
    %v272 = vld [vmem:[#allocation5 + $0x40] sm:$0xff]
    %v273 = vld [vmem:[#allocation5 + $0x48] sm:$0xff]
    %v274 = vld [vmem:[#allocation5 + $0x50] sm:$0xff]
    %v275 = vld [vmem:[#allocation5 + $0x58] sm:$0xff]
    %v276 = vld [vmem:[#allocation5 + $0x60] sm:$0xff]
    %v277 = vld [vmem:[#allocation5 + $0x68] sm:$0xff]
    %v278 = vld [vmem:[#allocation5 + $0x70] sm:$0xff]
    %v279 = vld [vmem:[#allocation5 + $0x78] sm:$0xff]
    %280 = vmatprep.subr.mxu0 0.0
    %281 = vmatpush1.msra.mxu0 %v264
    %282 = vmatprep.subr.mxu0 0.0
    %283 = vmatpush1.msra.mxu0 %v265
    %284 = vmatprep.subr.mxu0 0.0
    %285 = vmatpush1.msra.mxu0 %v266
    %286 = vmatprep.subr.mxu0 0.0
    %287 = vmatpush1.msra.mxu0 %v267
    %288 = vmatprep.subr.mxu0 0.0
    %289 = vmatpush1.msra.mxu0 %v268
    %290 = vmatprep.subr.mxu0 0.0
    %291 = vmatpush1.msra.mxu0 %v269
    %292 = vmatprep.subr.mxu0 0.0
    %293 = vmatpush1.msra.mxu0 %v270
    %294 = vmatprep.subr.mxu0 0.0
    %295 = vmatpush1.msra.mxu0 %v271
    %296 = vmatprep.subr.mxu0 0.0
    %297 = vmatpush1.msra.mxu0 %v272
    %298 = vmatprep.subr.mxu0 0.0
    %299 = vmatpush1.msra.mxu0 %v273
    %300 = vmatprep.subr.mxu0 0.0
    %301 = vmatpush1.msra.mxu0 %v274
    %302 = vmatprep.subr.mxu0 0.0
    %303 = vmatpush1.msra.mxu0 %v275
    %304 = vmatprep.subr.mxu0 0.0
    %305 = vmatpush1.msra.mxu0 %v276
    %306 = vmatprep.subr.mxu0 0.0
    %307 = vmatpush1.msra.mxu0 %v277
    %308 = vmatprep.subr.mxu0 0.0
    %309 = vmatpush1.msra.mxu0 %v278
    %310 = vmatprep.subr.mxu0 0.0
    %311 = vmatpush1.msra.mxu0 %v279
    %312 = vmatprep.subr.mxu0 0.0
    %313 = vmatpush1.msra.mxu0 0.0
    %314 = vmatprep.subr.mxu0 0.0
    %315 = vmatpush1.msra.mxu0 0.0
    %316 = vmatprep.subr.mxu0 0.0
    %317 = vmatpush1.msra.mxu0 0.0
    %318 = vmatprep.subr.mxu0 0.0
    %319 = vmatpush1.msra.mxu0 0.0
    %320 = vmatprep.subr.mxu0 0.0
    %321 = vmatpush1.msra.mxu0 0.0
    %322 = vmatprep.subr.mxu0 0.0
    %323 = vmatpush1.msra.mxu0 0.0
    %324 = vmatprep.subr.mxu0 0.0
    %325 = vmatpush1.msra.mxu0 0.0
    %326 = vmatprep.subr.mxu0 0.0
    %327 = vmatpush1.msra.mxu0 0.0
    %328 = vmatprep.subr.mxu0 0.0
    %329 = vmatpush1.msra.mxu0 0.0
    %330 = vmatprep.subr.mxu0 0.0
    %331 = vmatpush1.msra.mxu0 0.0
    %332 = vmatprep.subr.mxu0 0.0
    %333 = vmatpush1.msra.mxu0 0.0
    %334 = vmatprep.subr.mxu0 0.0
    %335 = vmatpush1.msra.mxu0 0.0
    %336 = vmatprep.subr.mxu0 0.0
    %337 = vmatpush1.msra.mxu0 0.0
    %338 = vmatprep.subr.mxu0 0.0
    %339 = vmatpush1.msra.mxu0 0.0
    %340 = vmatprep.subr.mxu0 0.0
    %341 = vmatpush1.msra.mxu0 0.0
    %342 = vmatprep.subr.mxu0 0.0
    %343 = vmatpush1.msra.mxu0 0.0
    %344 = vmatprep.mubr.f32.mxu0 0.0
    %345 = vmatmul.mubr.f32.gmra.mrb[0].mxu0 %v202
    %v346 = vpop.f32.mrb[0].mxu0
    %v347 = vadd.f32 0.0, %v346
    %v348 = vpop.f32.mrb[0].mxu0
    %349 = vmatprep.mubr.f32.mxu0 0.0
    %350 = vmatmul.mubr.f32.gmra.mrb[0].mxu0 %v263
    %v351 = vpop.f32.mrb[0].mxu0
    %v352 = vadd.f32 0.0, %v351
    %v353 = vpop.f32.mrb[0].mxu0
    %354 = vdwg.mxu0
    %v355 = vld [vmem:[#allocation7] sm:$0xff]
    %v356 = vld [vmem:[#allocation7 + $0x8] sm:$0xff]
    %v357 = vld [vmem:[#allocation7 + $0x10] sm:$0xff]
    %v358 = vld [vmem:[#allocation7 + $0x18] sm:$0xff]
    %v359 = vld [vmem:[#allocation7 + $0x20] sm:$0xff]
    %v360 = vld [vmem:[#allocation7 + $0x28] sm:$0xff]
    %v361 = vld [vmem:[#allocation7 + $0x30] sm:$0xff]
    %v362 = vld [vmem:[#allocation7 + $0x38] sm:$0xff]
    %v363 = vld [vmem:[#allocation7 + $0x40] sm:$0xff]
    %v364 = vld [vmem:[#allocation7 + $0x48] sm:$0xff]
    %v365 = vld [vmem:[#allocation7 + $0x50] sm:$0xff]
    %v366 = vld [vmem:[#allocation7 + $0x58] sm:$0xff]
    %v367 = vld [vmem:[#allocation7 + $0x60] sm:$0xff]
    %v368 = vld [vmem:[#allocation7 + $0x68] sm:$0xff]
    %v369 = vld [vmem:[#allocation7 + $0x70] sm:$0xff]
    %v370 = vld [vmem:[#allocation7 + $0x78] sm:$0xff]
    %v371 = vld [vmem:[#allocation7 + $0x80] sm:$0xff]
    %v372 = vld [vmem:[#allocation7 + $0x88] sm:$0xff]
    %v373 = vld [vmem:[#allocation7 + $0x90] sm:$0xff]
    %v374 = vld [vmem:[#allocation7 + $0x98] sm:$0xff]
    %v375 = vld [vmem:[#allocation7 + $0xa0] sm:$0xff]
    %v376 = vld [vmem:[#allocation7 + $0xa8] sm:$0xff]
    %v377 = vld [vmem:[#allocation7 + $0xb0] sm:$0xff]
    %v378 = vld [vmem:[#allocation7 + $0xb8] sm:$0xff]
    %v379 = vld [vmem:[#allocation7 + $0xc0] sm:$0xff]
    %v380 = vld [vmem:[#allocation7 + $0xc8] sm:$0xff]
    %v381 = vld [vmem:[#allocation7 + $0xd0] sm:$0xff]
    %v382 = vld [vmem:[#allocation7 + $0xd8] sm:$0xff]
    %v383 = vld [vmem:[#allocation7 + $0xe0] sm:$0xff]
    %v384 = vld [vmem:[#allocation7 + $0xe8] sm:$0xff]
    %v385 = vld [vmem:[#allocation7 + $0xf0] sm:$0xff]
    %v386 = vld [vmem:[#allocation7 + $0xf8] sm:$0xff]
    %v387 = vld [vmem:[%s5] sm:$0x1]
    %v389 = vlaneseq
    %v390 = vshrl.u32 %v389, 7
    %v391 = vsub.s32 0, %v390
    %v392 = vrot.slane %v387, %v391
    %394 = vmatprep.subr.mxu0 0.0
    %395 = vmatpush1.msra.mxu0 %v355
    %396 = vmatprep.subr.mxu0 0.0
    %397 = vmatpush1.msra.mxu0 %v356
    %398 = vmatprep.subr.mxu0 0.0
    %399 = vmatpush1.msra.mxu0 %v357
    %400 = vmatprep.subr.mxu0 0.0
    %401 = vmatpush1.msra.mxu0 %v358
    %402 = vmatprep.subr.mxu0 0.0
    %403 = vmatpush1.msra.mxu0 %v359
    %404 = vmatprep.subr.mxu0 0.0
    %405 = vmatpush1.msra.mxu0 %v360
    %406 = vmatprep.subr.mxu0 0.0
    %407 = vmatpush1.msra.mxu0 %v361
    %408 = vmatprep.subr.mxu0 0.0
    %409 = vmatpush1.msra.mxu0 %v362
    %410 = vmatprep.subr.mxu0 0.0
    %411 = vmatpush1.msra.mxu0 %v363
    %412 = vmatprep.subr.mxu0 0.0
    %413 = vmatpush1.msra.mxu0 %v364
    %414 = vmatprep.subr.mxu0 0.0
    %415 = vmatpush1.msra.mxu0 %v365
    %416 = vmatprep.subr.mxu0 0.0
    %417 = vmatpush1.msra.mxu0 %v366
    %418 = vmatprep.subr.mxu0 0.0
    %419 = vmatpush1.msra.mxu0 %v367
    %420 = vmatprep.subr.mxu0 0.0
    %421 = vmatpush1.msra.mxu0 %v368
    %422 = vmatprep.subr.mxu0 0.0
    %423 = vmatpush1.msra.mxu0 %v369
    %424 = vmatprep.subr.mxu0 0.0
    %425 = vmatpush1.msra.mxu0 %v370
    %426 = vmatprep.subr.mxu0 0.0
    %427 = vmatpush1.msra.mxu0 %v371
    %428 = vmatprep.subr.mxu0 0.0
    %429 = vmatpush1.msra.mxu0 %v372
    %430 = vmatprep.subr.mxu0 0.0
    %431 = vmatpush1.msra.mxu0 %v373
    %432 = vmatprep.subr.mxu0 0.0
    %433 = vmatpush1.msra.mxu0 %v374
    %434 = vmatprep.subr.mxu0 0.0
    %435 = vmatpush1.msra.mxu0 %v375
    %436 = vmatprep.subr.mxu0 0.0
    %437 = vmatpush1.msra.mxu0 %v376
    %438 = vmatprep.subr.mxu0 0.0
    %439 = vmatpush1.msra.mxu0 %v377
    %440 = vmatprep.subr.mxu0 0.0
    %441 = vmatpush1.msra.mxu0 %v378
    %442 = vmatprep.subr.mxu0 0.0
    %443 = vmatpush1.msra.mxu0 %v379
    %444 = vmatprep.subr.mxu0 0.0
    %445 = vmatpush1.msra.mxu0 %v380
    %446 = vmatprep.subr.mxu0 0.0
    %447 = vmatpush1.msra.mxu0 %v381
    %448 = vmatprep.subr.mxu0 0.0
    %449 = vmatpush1.msra.mxu0 %v382
    %450 = vmatprep.subr.mxu0 0.0
    %451 = vmatpush1.msra.mxu0 %v383
    %452 = vmatprep.subr.mxu0 0.0
    %453 = vmatpush1.msra.mxu0 %v384
    %454 = vmatprep.subr.mxu0 0.0
    %455 = vmatpush1.msra.mxu0 %v385
    %456 = vmatprep.subr.mxu0 0.0
    %457 = vmatpush1.msra.mxu0 %v386
    %458 = vmatprep.mubr.f32.mxu0 %v352
    %459 = vmatmul.mubr.f32.gmra.mrb[0].mxu0 %v347
    %v460 = vpop.f32.mrb[0].mxu0
    %v461 = vadd.f32 %v392, %v460
    %v462 = vpop.f32.mrb[0].mxu0
    %463 = vdwg.mxu0
    %464 = vmax.xlane.f32.xlu0 %v461
    %v465 = vpop.xlane.xlu0 %464
    %v466 = vsub.f32 %v461, %v465
    %v467 = vmul.f32 %v466, 1.442695
    %v468 = vpow.pop %v467
    %469 = vadd.xlane.f32.xlu0 %v468
    %v470 = vpop.xlane.xlu0 %469
    %v471 = vrcp.pop %v470
    %v472 = vmul.f32 %v468, %v471
    %473 = vst [vmem:[#allocation8] sm:$0xff] %v461
    %474 = vst [vmem:[#allocation9] sm:$0xff] %v472
    // Predicated region
    $region38: #{tpu_custom_call.1} parent=1 // pred_check
      _
    $region39: #{tpu_custom_call.1} parent=1 // pred_check_branch
      %476 = sbr.rel (0) target = $region41
    $region40: #{tpu_custom_call.1} parent=1 // pred_region
      %s478 = ssub.s32 128, 128
      %479 = vsyncadd [#allocation4], %s478
      %s481 = sshll.u32 [#allocation8], 4
      %s482 = int_to_ptr.vmem [resolvable:$true] %s481
      %484 = dma.vmem_to_hbm [thread:$0]  %s482, 128, %s6, [#allocation4]
    $region41: #{tpu_custom_call.1} parent=1 // pred_fallthru
      _
    // Predicated region
    $region42: #{tpu_custom_call.1} parent=1 // pred_check
      _
    $region43: #{tpu_custom_call.1} parent=1 // pred_check_branch
      %486 = sbr.rel (0) target = $region45
    $region44: #{tpu_custom_call.1} parent=1 // pred_region
      %s488 = ssub.s32 128, 128
      %489 = vsyncadd [#allocation10], %s488
      %s491 = sshll.u32 [#allocation9], 4
      %s492 = int_to_ptr.vmem [resolvable:$true] %s491
      %494 = dma.vmem_to_hbm [thread:$0]  %s492, 128, %s7, [#allocation10]
    $region45: #{tpu_custom_call.1} parent=1 // pred_fallthru
      _
    // Predicated region
    $region46: #{tpu_custom_call.1} parent=1 // pred_check
      _
    $region47: #{tpu_custom_call.1} parent=1 // pred_check_branch
      %496 = sbr.rel (0) target = $region49
    $region48: #{tpu_custom_call.1} parent=1 // pred_region
      %497 = dma.done [#allocation4], 128
    $region49: #{tpu_custom_call.1} parent=1 // pred_fallthru
      _
    // Predicated region
    $region50: #{tpu_custom_call.1} parent=1 // pred_check
      _
    $region51: #{tpu_custom_call.1} parent=1 // pred_check_branch
      %499 = sbr.rel (0) target = $region53
    $region52: #{tpu_custom_call.1} parent=1 // pred_region
      %500 = dma.done [#allocation10], 128
    $region53: #{tpu_custom_call.1} parent=1 // pred_fallthru
      _
    %501 = vsyncpa [#allocation3], 1
    %502 = vsyncpa [#allocation6], 1
    %503 = vsyncpa [#allocation4], 1
    %504 = vsyncpa [#allocation10], 1

</llo_original>
